<compile_context>
chip_gen: v6e
topology: v6e:2x2x1
jax: 0.10.0
libtpu: 0.0.40
codegen_flags: <defaults>
</compile_context>

<pallas_src>
import functools

import jax
import jax.numpy as jnp
from jax import lax
from jax.experimental import pallas as pl
from jax.experimental.pallas import tpu as pltpu


def _gram_exp(a, b):
    """exp(a @ b.T), contracting the last dim of both operands (no transpose)."""
    return jnp.exp(
        lax.dot_general(
            a,
            b,
            dimension_numbers=(((1,), (1,)), ((), ())),
            preferred_element_type=jnp.float32,
        )
    )


def _gmc_infonce_kernel(joint_ref, mod_ref, out_ref, jj_ref, dj_ref, *,
                        block_b, inv_temperature, inv_rows):
    m = pl.program_id(0)          # modality (outer, reduction)
    k = pl.program_id(1)          # column tile (inner, reduction)
    nk = pl.num_programs(1)
    last_m = pl.num_programs(0) - 1

    col = pl.multiple_of(k * block_b, block_b)

    joint = joint_ref[...]                                    # [B, D] (invariant)
    mod = mod_ref[...]                                        # [B, D] (per modality)
    mod_k = mod_ref[pl.ds(col, block_b), :]                   # [bk, D]
    joint_k = joint_ref[pl.ds(col, block_b), :]               # [bk, D]
    mk_scaled = mod_k * inv_temperature                       # fold 1/T into the varying operand

    @pl.when(jnp.logical_and(m == 0, k == 0))
    def _():
        out_ref[...] = jnp.zeros_like(out_ref)
        jj_ref[...] = jnp.zeros_like(jj_ref)

    @pl.when(k == 0)
    def _():
        dj_ref[...] = jnp.zeros_like(dj_ref)

    # ---- joint-joint gram: computed only on the m == 0 pass, then cached ----
    @pl.when(m == 0)
    def _():
        jk_scaled = joint_k * inv_temperature
        jj_tile = _gram_exp(jk_scaled, joint)                 # [bk, B]
        r = lax.broadcasted_iota(jnp.int32, jj_tile.shape, 0)
        c = lax.broadcasted_iota(jnp.int32, jj_tile.shape, 1)
        jj_tile = jnp.where(c == r + col, 0.0, jj_tile)       # mask global diagonal
        jj_ref[...] = jj_ref[...] + jnp.sum(jj_tile, axis=0, keepdims=True)

    # ---- cross and modality-modality gram column tiles ----
    cross_t = _gram_exp(mk_scaled, joint)                     # [bk, B]: exp(M_{col+r}.J_i / T)
    mm_t = _gram_exp(mk_scaled, mod)                          # [bk, B]: exp(M_{col+r}.M_j / T)

    # Per-joint-row cross denominator contribution (column sums of this tile).
    dj_ref[...] = dj_ref[...] + jnp.sum(cross_t, axis=0, keepdims=True)

    # Modality-row denominator is complete for the rows of this tile:
    #   sum_i exp(M.J/T) + sum_j exp(M.M/T) - exp(||M||^2/T)   (diag removed w/o iota mask)
    self_mm = jnp.exp(jnp.sum(mk_scaled * mod_k, axis=-1, keepdims=True))   # [bk, 1]
    denom_mod_k = (jnp.sum(cross_t, axis=-1, keepdims=True)
                   + jnp.sum(mm_t, axis=-1, keepdims=True)
                   - self_mm)                                               # [bk, 1]

    # Log-domain positive term (counted twice: once for the joint row, once for
    # the modality row): log(exp((J_i . M_i)/T)) == (J_i . M_i)/T.
    pos_k = jnp.sum(mk_scaled * joint_k, axis=-1, keepdims=True)            # [bk, 1]

    step_total = jnp.sum(jnp.log(denom_mod_k)) - 2.0 * jnp.sum(pos_k)
    out_ref[...] = out_ref[...] + step_total

    # Finalize the joint-row denominators for this modality on the last column tile.
    @pl.when(k == nk - 1)
    def _():
        denom_joint = dj_ref[...] + jj_ref[...]               # [1, B]
        out_ref[...] = out_ref[...] + jnp.sum(jnp.log(denom_joint))

    @pl.when(jnp.logical_and(m == last_m, k == nk - 1))
    def _():
        out_ref[...] = out_ref[...] * inv_rows                # mean over the 2B rows


def _pick_block_b(B, max_block=512):
    """Largest column-tile size <= max_block that divides B (multiple of 8 if possible)."""
    if B <= max_block:
        return B
    for cand in range(max_block, 7, -1):
        if B % cand == 0 and cand % 8 == 0:
            return cand
    return B


def gmc_loss_pallas(mods, joint, temperature, *, block_b=None):
    """mods: [M, B, D] stacked modality features; joint: [B, D]."""
    M, B, D = mods.shape
    assert joint.shape == (B, D)

    if block_b is None:
        block_b = _pick_block_b(B)
    assert B % block_b == 0, (B, block_b)
    nk = B // block_b

    kernel = functools.partial(
        _gmc_infonce_kernel,
        block_b=block_b,
        inv_temperature=float(1.0 / temperature),
        inv_rows=float(1.0 / (2 * B)),
    )

    # Advisory cost hint: cross + mm grams per modality plus one jj gram.
    flops = 2 * B * B * D * (2 * M + 1)
    transcendentals = B * B * (2 * M + 1) + M * B
    bytes_accessed = 4 * (M * B * D + B * D + 1)

    out = pl.pallas_call(
        kernel,
        out_shape=jax.ShapeDtypeStruct((1, 1), jnp.float32),
        grid_spec=pltpu.PrefetchScalarGridSpec(
            num_scalar_prefetch=0,
            grid=(M, nk),
            in_specs=[
                # joint: same full [B, D] block every grid step (not re-DMA'd)
                pl.BlockSpec((B, D), lambda m, k: (0, 0)),
                # per-modality slice of the stacked features (constant across k)
                pl.BlockSpec((pl.Squeezed(), B, D), lambda m, k: (m, 0, 0)),
            ],
            # same (1, 1) output block across the whole (reduction) grid
            out_specs=pl.BlockSpec((1, 1), lambda m, k: (0, 0)),
            scratch_shapes=[
                pltpu.VMEM((1, B), jnp.float32),   # cached jj diag-masked sums
                pltpu.VMEM((1, B), jnp.float32),   # per-joint-row cross sums (reset per m)
            ],
        ),
        compiler_params=pltpu.CompilerParams(
            dimension_semantics=("arbitrary", "arbitrary"),
            # <= ~56 MiB: below v7x's 64 MiB physical VMEM, above the 16/32 MiB
            # default scoped limits on v5e/v6e.
            vmem_limit_bytes=56 * 1024 * 1024,
        ),
        cost_estimate=pl.CostEstimate(
            flops=flops,
            transcendentals=transcendentals,
            bytes_accessed=bytes_accessed,
        ),
    )(joint, mods)
    return out[0, 0]


def gmc_loss_ref(mods, joint, temperature):
    """Pure-JAX reference mirroring the PyTorch infonce()."""
    M, B, D = mods.shape
    total = jnp.zeros((2 * B,), jnp.float32)
    for m in range(M):
        out = jnp.concatenate([joint, mods[m]], axis=0)             # [2B, D]
        sim = jnp.exp(out @ out.T / temperature)                    # [2B, 2B]
        mask = 1.0 - jnp.eye(2 * B, dtype=sim.dtype)
        denom = jnp.sum(sim * mask, axis=-1)                        # [2B]
        pos = jnp.exp(jnp.sum(joint * mods[m], axis=-1) / temperature)
        pos2 = jnp.concatenate([pos, pos], axis=0)
        total = total + (-jnp.log(pos2 / denom))
    return jnp.mean(total)


def _make_inputs(key, M, B, D):
    k_mods, k_joint = jax.random.split(key)
    mods = jax.random.normal(k_mods, (M, B, D), dtype=jnp.float32)
    mods = mods / jnp.linalg.norm(mods, axis=-1, keepdims=True)
    joint = jax.random.normal(k_joint, (B, D), dtype=jnp.float32)
    joint = joint / jnp.linalg.norm(joint, axis=-1, keepdims=True)
    return mods, joint


if __name__ == "__main__":
    temperature = 0.2
    key = jax.random.PRNGKey(0)
    k1, k2 = jax.random.split(key)

    # Small, forward-consistent shapes: 2 modalities, batch=8, feature dim=32
    # (single column tile).
    mods, joint = _make_inputs(k1, 2, 8, 32)
    loss = jax.block_until_ready(gmc_loss_pallas(mods, joint, temperature))
    ref = gmc_loss_ref(mods, joint, temperature)
    assert jnp.isfinite(loss), "kernel produced non-finite loss"
    assert jnp.allclose(loss, ref, rtol=1e-3, atol=1e-3), (loss, ref)

    # Exercise the flash-style column-tiled path (4 column tiles, 3 modalities).
    mods2, joint2 = _make_inputs(k2, 3, 32, 128)
    loss2 = jax.block_until_ready(gmc_loss_pallas(mods2, joint2, temperature, block_b=8))
    ref2 = gmc_loss_ref(mods2, joint2, temperature)
    assert jnp.isfinite(loss2), "tiled kernel produced non-finite loss"
    assert jnp.allclose(loss2, ref2, rtol=1e-3, atol=1e-3), (loss2, ref2)

    # TODO(synk): self.criterion (CrossEntropyLoss) and self.similarity_f
    # (CosineSimilarity) are declared in __init__ but never used in forward(),
    # so they are intentionally not implemented.
    print("KERNEL_OK")
</pallas_src>

<mosaic_0001>
module attributes {stable_mosaic.version = 11 : i64} {
  func.func @_gmc_infonce_kernel(%arg0: i32, %arg1: i32, %arg2: memref<8x32xf32, #tpu.memory_space<vmem>>, %arg3: memref<1x8x32xf32, #tpu.memory_space<vmem>>, %arg4: memref<1x1xf32, #tpu.memory_space<vmem>>, %arg5: memref<1x8xf32, #tpu.memory_space<vmem>>, %arg6: memref<1x8xf32, #tpu.memory_space<vmem>>) attributes {dimension_semantics = [#tpu.dimension_semantics<arbitrary>, #tpu.dimension_semantics<arbitrary>], iteration_bounds = array<i64: 2, 1>, scalar_prefetch = 0 : i64, scratch_operands = 2 : i64, tpu.core_type = #tpu.core_type<tc>, window_params = [{pipeline_mode = #tpu.pipeline_mode<synchronous>, transform_indices = @transform_0, window_bounds = array<i64: 8, 32>}, {transform_indices = @transform_1, window_bounds = array<i64: 1, 8, 32>}, {pipeline_mode = #tpu.pipeline_mode<synchronous>, transform_indices = @transform_2, window_bounds = array<i64: 1, 1>}]} {
    %c8_i32 = arith.constant 8 : i32
    %0 = arith.muli %arg1, %c8_i32 : i32
    %1 = tpu.assume_multiple %0, 8 : i32
    %c0 = arith.constant 0 : index
    %c0_0 = arith.constant 0 : index
    %2 = vector.load %arg2[%c0, %c0_0] : memref<8x32xf32, #tpu.memory_space<vmem>>, vector<8x32xf32>
    %c0_1 = arith.constant 0 : index
    %c0_2 = arith.constant 0 : index
    %c0_3 = arith.constant 0 : index
    %3 = vector.load %arg3[%c0_1, %c0_2, %c0_3] : memref<1x8x32xf32, #tpu.memory_space<vmem>>, vector<1x8x32xf32>
    %4 = vector.shape_cast %3 : vector<1x8x32xf32> to vector<8x32xf32>
    %c0_4 = arith.constant 0 : index
    %5 = arith.index_cast %1 : i32 to index
    %c0_5 = arith.constant 0 : index
    %6 = vector.load %arg3[%c0_4, %5, %c0_5] : memref<1x8x32xf32, #tpu.memory_space<vmem>>, vector<1x8x32xf32>
    %7 = vector.shape_cast %6 : vector<1x8x32xf32> to vector<8x32xf32>
    %8 = arith.index_cast %1 : i32 to index
    %c0_6 = arith.constant 0 : index
    %9 = vector.load %arg2[%8, %c0_6] : memref<8x32xf32, #tpu.memory_space<vmem>>, vector<8x32xf32>
    %cst = arith.constant 5.000000e+00 : f32
    %10 = vector.broadcast %cst : f32 to vector<8x32xf32>
    %11 = arith.mulf %7, %10 : vector<8x32xf32>
    %c0_i32 = arith.constant 0 : i32
    %12 = arith.cmpi eq, %arg0, %c0_i32 : i32
    %c0_i32_7 = arith.constant 0 : i32
    %13 = arith.cmpi eq, %arg1, %c0_i32_7 : i32
    %14 = arith.andi %12, %13 : i1
    %15 = arith.extui %14 : i1 to i32
    %c0_i32_8 = arith.constant 0 : i32
    %16 = arith.cmpi ne, %15, %c0_i32_8 : i32
    scf.if %16 {
      %cst_35 = arith.constant 0.000000e+00 : f32
      %68 = vector.broadcast %cst_35 : f32 to vector<1x1xf32>
      %c0_36 = arith.constant 0 : index
      %c0_37 = arith.constant 0 : index
      %69 = vector.load %arg4[%c0_36, %c0_37] : memref<1x1xf32, #tpu.memory_space<vmem>>, vector<1x1xf32>
      tpu.vector_store %arg4[%c0_36, %c0_37], %68 {strides = array<i32>} : memref<1x1xf32, #tpu.memory_space<vmem>>, vector<1x1xf32>,
      %cst_38 = arith.constant 0.000000e+00 : f32
      %70 = vector.broadcast %cst_38 : f32 to vector<1x8xf32>
      %c0_39 = arith.constant 0 : index
      %c0_40 = arith.constant 0 : index
      %71 = vector.load %arg5[%c0_39, %c0_40] : memref<1x8xf32, #tpu.memory_space<vmem>>, vector<1x8xf32>
      tpu.vector_store %arg5[%c0_39, %c0_40], %70 {strides = array<i32>} : memref<1x8xf32, #tpu.memory_space<vmem>>, vector<1x8xf32>,
    } else {
    }
    %c0_i32_9 = arith.constant 0 : i32
    %17 = arith.cmpi eq, %arg1, %c0_i32_9 : i32
    %18 = arith.extui %17 : i1 to i32
    %c0_i32_10 = arith.constant 0 : i32
    %19 = arith.cmpi ne, %18, %c0_i32_10 : i32
    scf.if %19 {
      %cst_35 = arith.constant 0.000000e+00 : f32
      %68 = vector.broadcast %cst_35 : f32 to vector<1x8xf32>
      %c0_36 = arith.constant 0 : index
      %c0_37 = arith.constant 0 : index
      %69 = vector.load %arg6[%c0_36, %c0_37] : memref<1x8xf32, #tpu.memory_space<vmem>>, vector<1x8xf32>
      tpu.vector_store %arg6[%c0_36, %c0_37], %68 {strides = array<i32>} : memref<1x8xf32, #tpu.memory_space<vmem>>, vector<1x8xf32>,
    } else {
    }
    %c0_i32_11 = arith.constant 0 : i32
    %20 = arith.cmpi eq, %arg0, %c0_i32_11 : i32
    %21 = arith.extui %20 : i1 to i32
    %c0_i32_12 = arith.constant 0 : i32
    %22 = arith.cmpi ne, %21, %c0_i32_12 : i32
    scf.if %22 {
      %cst_35 = arith.constant 5.000000e+00 : f32
      %68 = vector.broadcast %cst_35 : f32 to vector<8x32xf32>
      %69 = arith.mulf %9, %68 : vector<8x32xf32>
      %cst_36 = arith.constant dense<0.000000e+00> : vector<8x8xf32>
      %70 = tpu.matmul %69, %2, %cst_36 {dimension_numbers = #tpu.dot_dimension_numbers<[1], [1], [0], [0], [0, 0, 1, 0], [], []>} : vector<8x32xf32>, vector<8x32xf32>, vector<8x8xf32> -> vector<8x8xf32>
      %71 = math.exp %70 : vector<8x8xf32>
      %72 = tpu.iota {dimensions = array<i32: 0>} : vector<8x8xi32>
      %73 = tpu.iota {dimensions = array<i32: 1>} : vector<8x8xi32>
      %74 = vector.broadcast %1 : i32 to vector<8x8xi32>
      %75 = arith.addi %72, %74 : vector<8x8xi32>
      %76 = arith.cmpi eq, %73, %75 : vector<8x8xi32>
      %cst_37 = arith.constant 0.000000e+00 : f32
      %77 = vector.broadcast %cst_37 : f32 to vector<8x8xf32>
      %78 = arith.select %76, %77, %71 : vector<8x8xi1>, vector<8x8xf32>
      %c0_38 = arith.constant 0 : index
      %c0_39 = arith.constant 0 : index
      %79 = vector.load %arg5[%c0_38, %c0_39] : memref<1x8xf32, #tpu.memory_space<vmem>>, vector<1x8xf32>
      %cst_40 = arith.constant dense<0.000000e+00> : vector<8xf32>
      %80 = vector.multi_reduction <add>, %78, %cst_40 [0] : vector<8x8xf32> to vector<8xf32>
      %81 = vector.shape_cast %80 : vector<8xf32> to vector<1x8xf32>
      %82 = arith.addf %79, %81 : vector<1x8xf32>
      %c0_41 = arith.constant 0 : index
      %c0_42 = arith.constant 0 : index
      %83 = vector.load %arg5[%c0_41, %c0_42] : memref<1x8xf32, #tpu.memory_space<vmem>>, vector<1x8xf32>
      tpu.vector_store %arg5[%c0_41, %c0_42], %82 {strides = array<i32>} : memref<1x8xf32, #tpu.memory_space<vmem>>, vector<1x8xf32>,
    } else {
    }
    %cst_13 = arith.constant dense<0.000000e+00> : vector<8x8xf32>
    %23 = tpu.matmul %11, %2, %cst_13 {dimension_numbers = #tpu.dot_dimension_numbers<[1], [1], [0], [0], [0, 0, 1, 0], [], []>} : vector<8x32xf32>, vector<8x32xf32>, vector<8x8xf32> -> vector<8x8xf32>
    %24 = math.exp %23 : vector<8x8xf32>
    %cst_14 = arith.constant dense<0.000000e+00> : vector<8x8xf32>
    %25 = tpu.matmul %11, %4, %cst_14 {dimension_numbers = #tpu.dot_dimension_numbers<[1], [1], [0], [0], [0, 0, 1, 0], [], []>} : vector<8x32xf32>, vector<8x32xf32>, vector<8x8xf32> -> vector<8x8xf32>
    %26 = math.exp %25 : vector<8x8xf32>
    %c0_15 = arith.constant 0 : index
    %c0_16 = arith.constant 0 : index
    %27 = vector.load %arg6[%c0_15, %c0_16] : memref<1x8xf32, #tpu.memory_space<vmem>>, vector<1x8xf32>
    %cst_17 = arith.constant dense<0.000000e+00> : vector<8xf32>
    %28 = vector.multi_reduction <add>, %24, %cst_17 [0] : vector<8x8xf32> to vector<8xf32>
    %29 = vector.shape_cast %28 : vector<8xf32> to vector<1x8xf32>
    %30 = arith.addf %27, %29 : vector<1x8xf32>
    %c0_18 = arith.constant 0 : index
    %c0_19 = arith.constant 0 : index
    %31 = vector.load %arg6[%c0_18, %c0_19] : memref<1x8xf32, #tpu.memory_space<vmem>>, vector<1x8xf32>
    tpu.vector_store %arg6[%c0_18, %c0_19], %30 {strides = array<i32>} : memref<1x8xf32, #tpu.memory_space<vmem>>, vector<1x8xf32>,
    %32 = arith.mulf %11, %7 : vector<8x32xf32>
    %cst_20 = arith.constant dense<0.000000e+00> : vector<8xf32>
    %33 = vector.multi_reduction <add>, %32, %cst_20 [1] : vector<8x32xf32> to vector<8xf32>
    %34 = vector.shape_cast %33 : vector<8xf32> to vector<8x1xf32>
    %35 = math.exp %34 : vector<8x1xf32>
    %cst_21 = arith.constant dense<0.000000e+00> : vector<8xf32>
    %36 = vector.multi_reduction <add>, %24, %cst_21 [1] : vector<8x8xf32> to vector<8xf32>
    %37 = vector.shape_cast %36 : vector<8xf32> to vector<8x1xf32>
    %cst_22 = arith.constant dense<0.000000e+00> : vector<8xf32>
    %38 = vector.multi_reduction <add>, %26, %cst_22 [1] : vector<8x8xf32> to vector<8xf32>
    %39 = vector.shape_cast %38 : vector<8xf32> to vector<8x1xf32>
    %40 = arith.addf %37, %39 : vector<8x1xf32>
    %41 = arith.subf %40, %35 : vector<8x1xf32>
    %42 = arith.mulf %11, %9 : vector<8x32xf32>
    %cst_23 = arith.constant dense<0.000000e+00> : vector<8xf32>
    %43 = vector.multi_reduction <add>, %42, %cst_23 [1] : vector<8x32xf32> to vector<8xf32>
    %44 = vector.shape_cast %43 : vector<8xf32> to vector<8x1xf32>
    %45 = math.log %41 : vector<8x1xf32>
    %46 = vector.shape_cast %45 : vector<8x1xf32> to vector<1x8x1xf32>
    %cst_24 = arith.constant dense<0.000000e+00> : vector<1xf32>
    %47 = vector.multi_reduction <add>, %46, %cst_24 [1, 2] : vector<1x8x1xf32> to vector<1xf32>
    %48 = vector.shape_cast %47 : vector<1xf32> to vector<1x1x1xf32>
    %49 = vector.extract %48[0, 0, 0] : f32 from vector<1x1x1xf32>
    %50 = vector.shape_cast %44 : vector<8x1xf32> to vector<1x8x1xf32>
    %cst_25 = arith.constant dense<0.000000e+00> : vector<1xf32>
    %51 = vector.multi_reduction <add>, %50, %cst_25 [1, 2] : vector<1x8x1xf32> to vector<1xf32>
    %52 = vector.shape_cast %51 : vector<1xf32> to vector<1x1x1xf32>
    %53 = vector.extract %52[0, 0, 0] : f32 from vector<1x1x1xf32>
    %cst_26 = arith.constant 2.000000e+00 : f32
    %54 = arith.mulf %cst_26, %53 : f32
    %55 = arith.subf %49, %54 : f32
    %c0_27 = arith.constant 0 : index
    %c0_28 = arith.constant 0 : index
    %56 = vector.load %arg4[%c0_27, %c0_28] : memref<1x1xf32, #tpu.memory_space<vmem>>, vector<1x1xf32>
    %57 = vector.broadcast %55 : f32 to vector<1x1xf32>
    %58 = arith.addf %56, %57 : vector<1x1xf32>
    %c0_29 = arith.constant 0 : index
    %c0_30 = arith.constant 0 : index
    %59 = vector.load %arg4[%c0_29, %c0_30] : memref<1x1xf32, #tpu.memory_space<vmem>>, vector<1x1xf32>
    tpu.vector_store %arg4[%c0_29, %c0_30], %58 {strides = array<i32>} : memref<1x1xf32, #tpu.memory_space<vmem>>, vector<1x1xf32>,
    %c0_i32_31 = arith.constant 0 : i32
    %60 = arith.cmpi eq, %arg1, %c0_i32_31 : i32
    %61 = arith.extui %60 : i1 to i32
    %c0_i32_32 = arith.constant 0 : i32
    %62 = arith.cmpi ne, %61, %c0_i32_32 : i32
    scf.if %62 {
      %c0_35 = arith.constant 0 : index
      %c0_36 = arith.constant 0 : index
      %68 = vector.load %arg6[%c0_35, %c0_36] : memref<1x8xf32, #tpu.memory_space<vmem>>, vector<1x8xf32>
      %c0_37 = arith.constant 0 : index
      %c0_38 = arith.constant 0 : index
      %69 = vector.load %arg5[%c0_37, %c0_38] : memref<1x8xf32, #tpu.memory_space<vmem>>, vector<1x8xf32>
      %70 = arith.addf %68, %69 : vector<1x8xf32>
      %c0_39 = arith.constant 0 : index
      %c0_40 = arith.constant 0 : index
      %71 = vector.load %arg4[%c0_39, %c0_40] : memref<1x1xf32, #tpu.memory_space<vmem>>, vector<1x1xf32>
      %72 = math.log %70 : vector<1x8xf32>
      %73 = vector.shape_cast %72 : vector<1x8xf32> to vector<1x1x8xf32>
      %cst_41 = arith.constant dense<0.000000e+00> : vector<1xf32>
      %74 = vector.multi_reduction <add>, %73, %cst_41 [1, 2] : vector<1x1x8xf32> to vector<1xf32>
      %75 = vector.shape_cast %74 : vector<1xf32> to vector<1x1x1xf32>
      %76 = vector.extract %75[0, 0, 0] : f32 from vector<1x1x1xf32>
      %77 = vector.broadcast %76 : f32 to vector<1x1xf32>
      %78 = arith.addf %71, %77 : vector<1x1xf32>
      %c0_42 = arith.constant 0 : index
      %c0_43 = arith.constant 0 : index
      %79 = vector.load %arg4[%c0_42, %c0_43] : memref<1x1xf32, #tpu.memory_space<vmem>>, vector<1x1xf32>
      tpu.vector_store %arg4[%c0_42, %c0_43], %78 {strides = array<i32>} : memref<1x1xf32, #tpu.memory_space<vmem>>, vector<1x1xf32>,
    } else {
    }
    %c1_i32 = arith.constant 1 : i32
    %63 = arith.cmpi eq, %arg0, %c1_i32 : i32
    %c0_i32_33 = arith.constant 0 : i32
    %64 = arith.cmpi eq, %arg1, %c0_i32_33 : i32
    %65 = arith.andi %63, %64 : i1
    %66 = arith.extui %65 : i1 to i32
    %c0_i32_34 = arith.constant 0 : i32
    %67 = arith.cmpi ne, %66, %c0_i32_34 : i32
    scf.if %67 {
      %c0_35 = arith.constant 0 : index
      %c0_36 = arith.constant 0 : index
      %68 = vector.load %arg4[%c0_35, %c0_36] : memref<1x1xf32, #tpu.memory_space<vmem>>, vector<1x1xf32>
      %cst_37 = arith.constant 6.250000e-02 : f32
      %69 = vector.broadcast %cst_37 : f32 to vector<1x1xf32>
      %70 = arith.mulf %68, %69 : vector<1x1xf32>
      %c0_38 = arith.constant 0 : index
      %c0_39 = arith.constant 0 : index
      %71 = vector.load %arg4[%c0_38, %c0_39] : memref<1x1xf32, #tpu.memory_space<vmem>>, vector<1x1xf32>
      tpu.vector_store %arg4[%c0_38, %c0_39], %70 {strides = array<i32>} : memref<1x1xf32, #tpu.memory_space<vmem>>, vector<1x1xf32>,
    } else {
    }
    return
  }
  func.func @transform_0(%arg0: i32, %arg1: i32) -> (i32, i32) {
    %c0_i32 = arith.constant 0 : i32
    %c0_i32_0 = arith.constant 0 : i32
    %c0_i32_1 = arith.constant 0 : i32
    return %c0_i32, %c0_i32_0 : i32, i32
  }
  func.func @transform_1(%arg0: i32, %arg1: i32) -> (i32, i32, i32) {
    %c0_i32 = arith.constant 0 : i32
    %c0_i32_0 = arith.constant 0 : i32
    %c0_i32_1 = arith.constant 0 : i32
    return %arg0, %c0_i32, %c0_i32_0 : i32, i32, i32
  }
  func.func @transform_2(%arg0: i32, %arg1: i32) -> (i32, i32) {
    %c0_i32 = arith.constant 0 : i32
    %c0_i32_0 = arith.constant 0 : i32
    %c0_i32_1 = arith.constant 0 : i32
    return %c0_i32, %c0_i32_0 : i32, i32
  }
}

</mosaic_0001>

<llo_original>
// kernel: tpu_custom_call.1
$region0: #{tpu_custom_call.1}
  #allocation0 [shape = 'u32[]', space=smem, size = 0x4, offset = 0x4, fixed_abs, tag = 'smem constant byte address 0x4 - core index']
  #allocation1 [shape = 'u32[144,128]{1,0:T(1,128)}', space=vmem, size = 0x12000, scoped, tag = 'internal scratch']
  #allocation2 [shape = 'f32[1,8]{1,0:T(1,128)}', space=vmem, size = 0x200, scoped, tag = 'scratch operand']
  #allocation3 [shape = 'f32[1,8]{1,0:T(1,128)}', space=vmem, size = 0x200, scoped, tag = 'scratch operand']
  %s0 = inlined_call_operand.hbm [shape: f32[8,32], index: 0, kind: input, shape index: {}]
  %s1 = inlined_call_operand.hbm [shape: f32[2,8,32], index: 1, kind: input, shape index: {}]
  %s2 = inlined_call_operand.hbm [shape: f32[1,1], index: 2, kind: output, shape index: {}]
  %s3 = sld [smem:[#allocation0]]
  $region69: #{tpu_custom_call.1} parent=0
    _
  %s5 = ssub.s32 1, %s3
  %s6 = scalar_select 0, %s5, %s3
  $region1: #{tpu_custom_call.1} parent=0
    #allocation4 [shape = 'u8[4096]{0}', space=vmem, size = 0x1000, scoped, tag = 'input window, operand 0, single buffered']
    #allocation5 [shape = 's32[2]{0}', space=sflag, size = 0x8, scoped, tag = 'scoped memory for tpu_custom_call.1']
    #allocation6 [shape = 's32[2]{0}', space=sflag, size = 0x8, scoped, tag = 'scoped memory for tpu_custom_call.1']
    #allocation7 [shape = 'u8[8192]{0}', space=vmem, size = 0x2000, scoped, tag = 'input window, operand 1']
    #allocation8 [shape = 's32[2]{0}', space=sflag, size = 0x8, scoped, tag = 'scoped memory for tpu_custom_call.1']
    #allocation9 [shape = 'u8[512]{0}', space=vmem, size = 0x400, scoped, tag = 'output window, operand 0, single buffered']
    %7 = vsyncpa [#allocation5], 0
    %8 = vsyncpa [#allocation8], 0
    %s9 = scalar_lea.sflag [#allocation8], 1
    %10 = vsyncpa %s9, 0
    %11 = vsyncpa [#allocation6], 0
    loop: start=0, step=1, limit=4
    $region2: #{tpu_custom_call.1} parent=1 // loop_pre_header
      _
    $region3: #{tpu_custom_call.1} parent=1 // loop_header
      %s13 = sphi 0, %s17
      %p14 = scmp.ge.s32.totalorder %s13, 4
      %s20 = sphi 0, %s32
      %s21 = sphi 0, %s28
      %s22 = sphi 0, %s20
      %s23 = sphi 0, %s21
      %s24 = sphi 0, %s22
      %s25 = sphi 0, %s23
      %s33 = sphi 0, %s33
      %s35 = sphi 0, %s33
      %s36 = sphi 0, %s35
      %s50 = sphi 0, %s36
      %s56 = sphi 0, %s58
      %s59 = sphi 0, %s56
      %s60 = sphi 0, %s59
      %s76 = sphi 0, %s60
      %s80 = sphi 0, %s80
      %s82 = sphi 0, %s80
      %s83 = sphi 0, %s82
      %s97 = sphi 0, %s83
    $region4: #{tpu_custom_call.1} parent=1 // loop_header_branch
      %16 = sbr.rel (%p14) target = $region8
    $region5: #{tpu_custom_call.1} parent=1 // loop_body
      %s18 = ssub.s32 %s13, 1
      %s19 = ssub.s32 %s13, 2
      %s26 = sadd.s32 1, %s21
      %p27 = scmp.ge.s32.totalorder %s26, 1
      %s28 = scalar_select %p27, 0, %s26
      %s29 = sadd.s32 1, %s20
      %s30 = scalar_select %p27, %s29, %s20
      %p31 = scmp.ge.s32.totalorder %s30, 2
      %s32 = scalar_select %p31, 0, %s30
      %s34 = sadd.s32 %s33, 1
      %p37 = scmp.eq.s32.totalorder %s13, 1
      %p38 = scmp.ne.s32.totalorder %s33, %s35
      %p39 = scmp.eq.s32.totalorder %s13, 0
      %p40 = por %p38, %p39
      %p41 = scmp.ne.s32.totalorder %s33, %s35
      %p42 = scmp.eq.s32.totalorder %s18, 1
      %p43 = por %p41, %p42
      %p44 = scmp.ne.s32.totalorder %s35, %s36
      %p45 = scmp.eq.s32.totalorder %s18, 0
      %p46 = por %p44, %p45
      %p47 = scmp.ne.s32.totalorder %s35, %s36
      %p48 = scmp.eq.s32.totalorder %s19, 1
      %p49 = por %p47, %p48
      %p51 = scmp.ne.s32.totalorder %s36, %s50
      %p52 = scmp.eq.s32.totalorder %s19, 0
      %p53 = por %p51, %p52
      %s54 = ssub.s32 %s20, %s32
      %p55 = scmp.eq.s32.totalorder %s54, 0
      %s57 = sadd.s32 %s56, 1
      %s58 = scalar_select %p55, %s56, %s57
      %p61 = pneg %p55
      %p62 = scmp.eq.s32.totalorder %s13, 1
      %p63 = por %p61, %p62
      %p64 = scmp.ne.s32.totalorder %s56, %s59
      %p65 = scmp.eq.s32.totalorder %s13, 0
      %p66 = por %p64, %p65
      %p67 = scmp.ne.s32.totalorder %s56, %s59
      %p68 = scmp.eq.s32.totalorder %s18, 1
      %p69 = por %p67, %p68
      %p70 = scmp.ne.s32.totalorder %s59, %s60
      %p71 = scmp.eq.s32.totalorder %s18, 0
      %p72 = por %p70, %p71
      %p73 = scmp.ne.s32.totalorder %s59, %s60
      %p74 = scmp.eq.s32.totalorder %s19, 1
      %p75 = por %p73, %p74
      %p77 = scmp.ne.s32.totalorder %s60, %s76
      %p78 = scmp.eq.s32.totalorder %s19, 0
      %p79 = por %p77, %p78
      %s81 = sadd.s32 %s80, 1
      %p84 = scmp.eq.s32.totalorder %s13, 1
      %p85 = scmp.ne.s32.totalorder %s80, %s82
      %p86 = scmp.eq.s32.totalorder %s13, 0
      %p87 = por %p85, %p86
      %p88 = scmp.ne.s32.totalorder %s80, %s82
      %p89 = scmp.eq.s32.totalorder %s18, 1
      %p90 = por %p88, %p89
      %p91 = scmp.ne.s32.totalorder %s82, %s83
      %p92 = scmp.eq.s32.totalorder %s18, 0
      %p93 = por %p91, %p92
      %p94 = scmp.ne.s32.totalorder %s82, %s83
      %p95 = scmp.eq.s32.totalorder %s19, 1
      %p96 = por %p94, %p95
      %p98 = scmp.ne.s32.totalorder %s83, %s97
      %p99 = scmp.eq.s32.totalorder %s19, 0
      %p100 = por %p98, %p99
      %p101 = scmp.le.s32.totalorder 1, %s13
      %p102 = scmp.lt.s32.totalorder %s13, 3
      %p103 = pnand %p101, %p102
      %p104 = pneg %p103
      // Predicated region
      $region9: #{tpu_custom_call.1} parent=5 // pred_check
        _
      $region10: #{tpu_custom_call.1} parent=5 // pred_check_branch
        %106 = sbr.rel (%p103) target = $region12
      $region11: #{tpu_custom_call.1} parent=5 // pred_region
        %s107 = ssub.s32 %s13, 1
        // Predicated region
        $region13: #{tpu_custom_call.1} parent=11 // pred_check
          %p108 = pneg %p46
        $region14: #{tpu_custom_call.1} parent=11 // pred_check_branch
          %110 = sbr.rel (%p108) target = $region16
        $region15: #{tpu_custom_call.1} parent=11 // pred_region
          %s112 = ssub.s32 128, 128
          %113 = vsyncadd [#allocation5], %s112
          %s115 = sshll.u32 [#allocation4], 4
          %s116 = int_to_ptr.vmem [resolvable:$true] %s115
          %118 = dma.hbm_to_vmem [thread:$0]  %s0, 128, %s116, [#allocation5]
        $region16: #{tpu_custom_call.1} parent=11 // pred_fallthru
          _
      $region12: #{tpu_custom_call.1} parent=5 // pred_fallthru
        _
      %p119 = scmp.lt.s32.totalorder %s13, 2
      // Predicated region
      $region17: #{tpu_custom_call.1} parent=5 // pred_check
        %p120 = pneg %p119
      $region18: #{tpu_custom_call.1} parent=5 // pred_check_branch
        %122 = sbr.rel (%p120) target = $region20
      $region19: #{tpu_custom_call.1} parent=5 // pred_region
        // Predicated region
        $region21: #{tpu_custom_call.1} parent=19 // pred_check
          %p123 = pneg %p66
        $region22: #{tpu_custom_call.1} parent=19 // pred_check_branch
          %125 = sbr.rel (%p123) target = $region24
        $region23: #{tpu_custom_call.1} parent=19 // pred_region
          %s126 = sand.u32 %s56, 1
          %s127 = scalar_lea.sflag [#allocation8], %s126
          %s128 = sand.u32 %s56, 1
          %s129 = smul.addr %s128, 8
          %s130 = scalar_lea.vmem [#allocation7], %s129
          %s132 = ssub.s32 128, 128
          %133 = vsyncadd %s127, %s132
          %s134 = smul.addr %s20, 128
          %s135 = scalar_lea.hbm %s1, %s134
          %s137 = sshll.u32 %s130, 4
          %s138 = int_to_ptr.vmem [resolvable:$true] %s137
          %140 = dma.hbm_to_vmem [thread:$0]  %s135, 128, %s138, %s127
        $region24: #{tpu_custom_call.1} parent=19 // pred_fallthru
          _
      $region20: #{tpu_custom_call.1} parent=5 // pred_fallthru
        _
      %p141 = scmp.le.s32.totalorder 1, %s13
      %p142 = scmp.lt.s32.totalorder %s13, 3
      %p143 = pnand %p141, %p142
      %p144 = pneg %p143
      // Predicated region
      $region25: #{tpu_custom_call.1} parent=5 // pred_check
        _
      $region26: #{tpu_custom_call.1} parent=5 // pred_check_branch
        %146 = sbr.rel (%p143) target = $region28
      $region27: #{tpu_custom_call.1} parent=5 // pred_region
        %s147 = ssub.s32 %s13, 1
        // Predicated region
        $region29: #{tpu_custom_call.1} parent=27 // pred_check
          %p148 = pneg %p46
        $region30: #{tpu_custom_call.1} parent=27 // pred_check_branch
          %150 = sbr.rel (%p148) target = $region32
        $region31: #{tpu_custom_call.1} parent=27 // pred_region
          %151 = dma.done [#allocation5], 128
        $region32: #{tpu_custom_call.1} parent=27 // pred_fallthru
          _
        %s152 = sand.u32 %s59, 1
        %s153 = scalar_lea.sflag [#allocation8], %s152
        %s154 = sand.u32 %s59, 1
        %s155 = smul.addr %s154, 8
        %s156 = scalar_lea.vmem [#allocation7], %s155
        // Predicated region
        $region33: #{tpu_custom_call.1} parent=27 // pred_check
          %p157 = pneg %p72
        $region34: #{tpu_custom_call.1} parent=27 // pred_check_branch
          %159 = sbr.rel (%p157) target = $region36
        $region35: #{tpu_custom_call.1} parent=27 // pred_region
          %160 = dma.done %s153, 128
        $region36: #{tpu_custom_call.1} parent=27 // pred_fallthru
          _
        %p161 = pneg %p46
        %p162 = pneg %p43
        %s163 = sand.u32 %s59, 1
        %s164 = scalar_lea.sflag [#allocation8], %s163
        %s165 = sand.u32 %s59, 1
        %s166 = smul.addr %s165, 8
        %s167 = scalar_lea.vmem [#allocation7], %s166
        %p168 = pneg %p72
        %p169 = pneg %p69
        %p170 = pneg %p93
        %p171 = pneg %p90
        %s172 = smul.u32 %s23, 8
        %v173 = vld [vmem:[#allocation4] sm:$0xff]
        %v174 = vld [vmem:[%s156] sm:$0xff]
        %s175 = scalar_lea.vmem %s156, %s172 [#allocation7]
        %v176 = vld [vmem:[%s175] sm:$0xff]
        %s177 = scalar_lea.vmem [#allocation4], %s172
        %v178 = vld [vmem:[%s177] sm:$0xff]
        %v179 = vmul.f32 %v176, 5.0
        %p180 = scmp.eq.s32.totalorder %s22, 0
        %p181 = scmp.eq.s32.totalorder %s23, 0
        %p182 = pnand %p180, %p181
        %p183 = pneg %p182
        // Predicated region
        $region37: #{tpu_custom_call.1} parent=27 // pred_check
          _
        $region38: #{tpu_custom_call.1} parent=27 // pred_check_branch
          %185 = sbr.rel (%p182) target = $region40
        $region39: #{tpu_custom_call.1} parent=27 // pred_region
          %vm186 = vcmask 0
          %187 = vst.msk [vmem:[#allocation9] sm:$0x1] %vm186, 0.0
          %vm188 = vcmask 57344
          %189 = vst.msk [vmem:[#allocation2] sm:$0x1] %vm188, 0.0
        $region40: #{tpu_custom_call.1} parent=27 // pred_fallthru
          _
        // Predicated region
        $region41: #{tpu_custom_call.1} parent=27 // pred_check
          %p190 = pneg %p181
        $region42: #{tpu_custom_call.1} parent=27 // pred_check_branch
          %192 = sbr.rel (%p190) target = $region44
        $region43: #{tpu_custom_call.1} parent=27 // pred_region
          %vm193 = vcmask 57344
          %194 = vst.msk [vmem:[#allocation3] sm:$0x1] %vm193, 0.0
        $region44: #{tpu_custom_call.1} parent=27 // pred_fallthru
          _
        // Predicated region
        $region45: #{tpu_custom_call.1} parent=27 // pred_check
          %p195 = pneg %p180
        $region46: #{tpu_custom_call.1} parent=27 // pred_check_branch
          %197 = sbr.rel (%p195) target = $region48
        $region47: #{tpu_custom_call.1} parent=27 // pred_region
          %v198 = vmul.f32 %v178, 5.0
          %vm199 = vcmask 261120
          %v201 = vsel %vm199, %v198, 0
          %v204 = vsel %vm199, %v173, 0
          %206 = vmatprep.subr.mxu0 0.0
          %207 = vmatpush1.xpose.msra.mxu0 0.0
          %208 = vmatprep.subr.mxu0 0.0
          %209 = vmatpush1.xpose.msra.mxu0 0.0
          %210 = vmatprep.subr.mxu0 0.0
          %211 = vmatpush1.xpose.msra.mxu0 0.0
          %212 = vmatprep.subr.mxu0 0.0
          %213 = vmatpush1.xpose.msra.mxu0 0.0
          %214 = vmatprep.subr.mxu0 0.0
          %215 = vmatpush1.xpose.msra.mxu0 0.0
          %216 = vmatprep.subr.mxu0 0.0
          %217 = vmatpush1.xpose.msra.mxu0 0.0
          %218 = vmatprep.subr.mxu0 0.0
          %219 = vmatpush1.xpose.msra.mxu0 0.0
          %220 = vmatprep.subr.mxu0 0.0
          %221 = vmatpush1.xpose.msra.mxu0 0.0
          %222 = vmatprep.subr.mxu0 0.0
          %223 = vmatpush1.xpose.msra.mxu0 0.0
          %224 = vmatprep.subr.mxu0 0.0
          %225 = vmatpush1.xpose.msra.mxu0 0.0
          %226 = vmatprep.subr.mxu0 0.0
          %227 = vmatpush1.xpose.msra.mxu0 0.0
          %228 = vmatprep.subr.mxu0 0.0
          %229 = vmatpush1.xpose.msra.mxu0 0.0
          %230 = vmatprep.subr.mxu0 0.0
          %231 = vmatpush1.xpose.msra.mxu0 0.0
          %232 = vmatprep.subr.mxu0 0.0
          %233 = vmatpush1.xpose.msra.mxu0 0.0
          %234 = vmatprep.subr.mxu0 0.0
          %235 = vmatpush1.xpose.msra.mxu0 0.0
          %236 = vmatprep.subr.mxu0 0.0
          %237 = vmatpush1.xpose.msra.mxu0 %v204
          %238 = vmatprep.subr.mxu0 0.0
          %239 = vmatpush2.xpose.msra.mxu0 0.0
          %240 = vmatprep.subr.mxu0 0.0
          %241 = vmatpush2.xpose.msra.mxu0 0.0
          %242 = vmatprep.subr.mxu0 0.0
          %243 = vmatpush2.xpose.msra.mxu0 0.0
          %244 = vmatprep.subr.mxu0 0.0
          %245 = vmatpush2.xpose.msra.mxu0 0.0
          %246 = vmatprep.subr.mxu0 0.0
          %247 = vmatpush2.xpose.msra.mxu0 0.0
          %248 = vmatprep.subr.mxu0 0.0
          %249 = vmatpush2.xpose.msra.mxu0 0.0
          %250 = vmatprep.subr.mxu0 0.0
          %251 = vmatpush2.xpose.msra.mxu0 0.0
          %252 = vmatprep.subr.mxu0 0.0
          %253 = vmatpush2.xpose.msra.mxu0 0.0
          %254 = vmatprep.subr.mxu0 0.0
          %255 = vmatpush2.xpose.msra.mxu0 0.0
          %256 = vmatprep.subr.mxu0 0.0
          %257 = vmatpush2.xpose.msra.mxu0 0.0
          %258 = vmatprep.subr.mxu0 0.0
          %259 = vmatpush2.xpose.msra.mxu0 0.0
          %260 = vmatprep.subr.mxu0 0.0
          %261 = vmatpush2.xpose.msra.mxu0 0.0
          %262 = vmatprep.subr.mxu0 0.0
          %263 = vmatpush2.xpose.msra.mxu0 0.0
          %264 = vmatprep.subr.mxu0 0.0
          %265 = vmatpush2.xpose.msra.mxu0 0.0
          %266 = vmatprep.subr.mxu0 0.0
          %267 = vmatpush2.xpose.msra.mxu0 0.0
          %268 = vmatprep.subr.mxu0 0.0
          %269 = vmatpush2.xpose.msra.mxu0 0.0
          %270 = vmatprep.mubr.f32.mxu0 0.0
          %271 = vmatmul.mubr.f32.gmra.mxu0 %v201
          %v272 = vpop.f32.mrf.mxu0
          %v273 = vadd.f32 0.0, %v272
          %v274 = vpop.f32.mrf.mxu0
          %275 = vdwg.mxu0
          %v276 = vmul.f32 %v273, 1.442695
          %v277 = vpow.pop %v276
          %v278 = vlaneseq
          %v279 = vshrl.u32 %v278, 7
          %v280 = vlaneseq
          %v281 = vand.u32 %v280, 127
          %v282 = vstv %s172
          %v283 = vadd.s32 %v279, %v282
          %vm284 = vcmp.eq.s32.totalorder %v281, %v283
          %v285 = vsel %vm284, 0.0, %v277
          %v286 = vld [vmem:[#allocation2] sm:$0x1]
          %vm287 = vcmask 64512
          %v288 = vsel %vm287, %v285, 0.0
          %v289 = vrot.slane %v288, 4
          %v290 = vadd.f32 %v288, %v289
          %v291 = vrot.slane %v290, 2
          %v292 = vadd.f32 %v290, %v291
          %v293 = vrot.slane %v292, 1
          %v294 = vadd.f32 %v292, %v293
          %v295 = vadd.f32 %v286, %v294
          %vm296 = vcmask 57344
          %297 = vst.msk [vmem:[#allocation2] sm:$0x1] %vm296, %v295
        $region48: #{tpu_custom_call.1} parent=27 // pred_fallthru
          _
        %vm298 = vcmask 261120
        %v300 = vsel %vm298, %v179, 0
        %v303 = vsel %vm298, %v173, 0
        %305 = vmatprep.subr.mxu0 0.0
        %306 = vmatpush1.xpose.msra.mxu0 0.0
        %307 = vmatprep.subr.mxu0 0.0
        %308 = vmatpush1.xpose.msra.mxu0 0.0
        %309 = vmatprep.subr.mxu0 0.0
        %310 = vmatpush1.xpose.msra.mxu0 0.0
        %311 = vmatprep.subr.mxu0 0.0
        %312 = vmatpush1.xpose.msra.mxu0 0.0
        %313 = vmatprep.subr.mxu0 0.0
        %314 = vmatpush1.xpose.msra.mxu0 0.0
        %315 = vmatprep.subr.mxu0 0.0
        %316 = vmatpush1.xpose.msra.mxu0 0.0
        %317 = vmatprep.subr.mxu0 0.0
        %318 = vmatpush1.xpose.msra.mxu0 0.0
        %319 = vmatprep.subr.mxu0 0.0
        %320 = vmatpush1.xpose.msra.mxu0 0.0
        %321 = vmatprep.subr.mxu0 0.0
        %322 = vmatpush1.xpose.msra.mxu0 0.0
        %323 = vmatprep.subr.mxu0 0.0
        %324 = vmatpush1.xpose.msra.mxu0 0.0
        %325 = vmatprep.subr.mxu0 0.0
        %326 = vmatpush1.xpose.msra.mxu0 0.0
        %327 = vmatprep.subr.mxu0 0.0
        %328 = vmatpush1.xpose.msra.mxu0 0.0
        %329 = vmatprep.subr.mxu0 0.0
        %330 = vmatpush1.xpose.msra.mxu0 0.0
        %331 = vmatprep.subr.mxu0 0.0
        %332 = vmatpush1.xpose.msra.mxu0 0.0
        %333 = vmatprep.subr.mxu0 0.0
        %334 = vmatpush1.xpose.msra.mxu0 0.0
        %335 = vmatprep.subr.mxu0 0.0
        %336 = vmatpush1.xpose.msra.mxu0 %v303
        %337 = vmatprep.subr.mxu0 0.0
        %338 = vmatpush2.xpose.msra.mxu0 0.0
        %339 = vmatprep.subr.mxu0 0.0
        %340 = vmatpush2.xpose.msra.mxu0 0.0
        %341 = vmatprep.subr.mxu0 0.0
        %342 = vmatpush2.xpose.msra.mxu0 0.0
        %343 = vmatprep.subr.mxu0 0.0
        %344 = vmatpush2.xpose.msra.mxu0 0.0
        %345 = vmatprep.subr.mxu0 0.0
        %346 = vmatpush2.xpose.msra.mxu0 0.0
        %347 = vmatprep.subr.mxu0 0.0
        %348 = vmatpush2.xpose.msra.mxu0 0.0
        %349 = vmatprep.subr.mxu0 0.0
        %350 = vmatpush2.xpose.msra.mxu0 0.0
        %351 = vmatprep.subr.mxu0 0.0
        %352 = vmatpush2.xpose.msra.mxu0 0.0
        %353 = vmatprep.subr.mxu0 0.0
        %354 = vmatpush2.xpose.msra.mxu0 0.0
        %355 = vmatprep.subr.mxu0 0.0
        %356 = vmatpush2.xpose.msra.mxu0 0.0
        %357 = vmatprep.subr.mxu0 0.0
        %358 = vmatpush2.xpose.msra.mxu0 0.0
        %359 = vmatprep.subr.mxu0 0.0
        %360 = vmatpush2.xpose.msra.mxu0 0.0
        %361 = vmatprep.subr.mxu0 0.0
        %362 = vmatpush2.xpose.msra.mxu0 0.0
        %363 = vmatprep.subr.mxu0 0.0
        %364 = vmatpush2.xpose.msra.mxu0 0.0
        %365 = vmatprep.subr.mxu0 0.0
        %366 = vmatpush2.xpose.msra.mxu0 0.0
        %367 = vmatprep.subr.mxu0 0.0
        %368 = vmatpush2.xpose.msra.mxu0 0.0
        %369 = vmatprep.mubr.f32.mxu0 0.0
        %370 = vmatmul.mubr.f32.gmra.mxu0 %v300
        %v371 = vpop.f32.mrf.mxu0
        %v372 = vadd.f32 0.0, %v371
        %v373 = vpop.f32.mrf.mxu0
        %374 = vdwg.mxu0
        %v375 = vmul.f32 %v372, 1.442695
        %v376 = vpow.pop %v375
        %v378 = vsel %vm298, %v174, 0
        %380 = vmatprep.subr.mxu0 0.0
        %381 = vmatpush1.xpose.msra.mxu0 0.0
        %382 = vmatprep.subr.mxu0 0.0
        %383 = vmatpush1.xpose.msra.mxu0 0.0
        %384 = vmatprep.subr.mxu0 0.0
        %385 = vmatpush1.xpose.msra.mxu0 0.0
        %386 = vmatprep.subr.mxu0 0.0
        %387 = vmatpush1.xpose.msra.mxu0 0.0
        %388 = vmatprep.subr.mxu0 0.0
        %389 = vmatpush1.xpose.msra.mxu0 0.0
        %390 = vmatprep.subr.mxu0 0.0
        %391 = vmatpush1.xpose.msra.mxu0 0.0
        %392 = vmatprep.subr.mxu0 0.0
        %393 = vmatpush1.xpose.msra.mxu0 0.0
        %394 = vmatprep.subr.mxu0 0.0
        %395 = vmatpush1.xpose.msra.mxu0 0.0
        %396 = vmatprep.subr.mxu0 0.0
        %397 = vmatpush1.xpose.msra.mxu0 0.0
        %398 = vmatprep.subr.mxu0 0.0
        %399 = vmatpush1.xpose.msra.mxu0 0.0
        %400 = vmatprep.subr.mxu0 0.0
        %401 = vmatpush1.xpose.msra.mxu0 0.0
        %402 = vmatprep.subr.mxu0 0.0
        %403 = vmatpush1.xpose.msra.mxu0 0.0
        %404 = vmatprep.subr.mxu0 0.0
        %405 = vmatpush1.xpose.msra.mxu0 0.0
        %406 = vmatprep.subr.mxu0 0.0
        %407 = vmatpush1.xpose.msra.mxu0 0.0
        %408 = vmatprep.subr.mxu0 0.0
        %409 = vmatpush1.xpose.msra.mxu0 0.0
        %410 = vmatprep.subr.mxu0 0.0
        %411 = vmatpush1.xpose.msra.mxu0 %v378
        %412 = vmatprep.subr.mxu0 0.0
        %413 = vmatpush2.xpose.msra.mxu0 0.0
        %414 = vmatprep.subr.mxu0 0.0
        %415 = vmatpush2.xpose.msra.mxu0 0.0
        %416 = vmatprep.subr.mxu0 0.0
        %417 = vmatpush2.xpose.msra.mxu0 0.0
        %418 = vmatprep.subr.mxu0 0.0
        %419 = vmatpush2.xpose.msra.mxu0 0.0
        %420 = vmatprep.subr.mxu0 0.0
        %421 = vmatpush2.xpose.msra.mxu0 0.0
        %422 = vmatprep.subr.mxu0 0.0
        %423 = vmatpush2.xpose.msra.mxu0 0.0
        %424 = vmatprep.subr.mxu0 0.0
        %425 = vmatpush2.xpose.msra.mxu0 0.0
        %426 = vmatprep.subr.mxu0 0.0
        %427 = vmatpush2.xpose.msra.mxu0 0.0
        %428 = vmatprep.subr.mxu0 0.0
        %429 = vmatpush2.xpose.msra.mxu0 0.0
        %430 = vmatprep.subr.mxu0 0.0
        %431 = vmatpush2.xpose.msra.mxu0 0.0
        %432 = vmatprep.subr.mxu0 0.0
        %433 = vmatpush2.xpose.msra.mxu0 0.0
        %434 = vmatprep.subr.mxu0 0.0
        %435 = vmatpush2.xpose.msra.mxu0 0.0
        %436 = vmatprep.subr.mxu0 0.0
        %437 = vmatpush2.xpose.msra.mxu0 0.0
        %438 = vmatprep.subr.mxu0 0.0
        %439 = vmatpush2.xpose.msra.mxu0 0.0
        %440 = vmatprep.subr.mxu0 0.0
        %441 = vmatpush2.xpose.msra.mxu0 0.0
        %442 = vmatprep.subr.mxu0 0.0
        %443 = vmatpush2.xpose.msra.mxu0 0.0
        %444 = vmatprep.mubr.f32.mxu0 0.0
        %445 = vmatmul.mubr.f32.gmra.mxu0 %v300
        %v446 = vpop.f32.mrf.mxu0
        %v447 = vadd.f32 0.0, %v446
        %v448 = vpop.f32.mrf.mxu0
        %449 = vdwg.mxu0
        %v450 = vmul.f32 %v447, 1.442695
        %v451 = vpow.pop %v450
        %v452 = vld [vmem:[#allocation3] sm:$0x1]
        %vm453 = vcmask 64512
        %v454 = vsel %vm453, %v376, 0.0
        %v455 = vrot.slane %v454, 4
        %v456 = vadd.f32 %v454, %v455
        %v457 = vrot.slane %v456, 2
        %v458 = vadd.f32 %v456, %v457
        %v459 = vrot.slane %v458, 1
        %v460 = vadd.f32 %v458, %v459
        %v461 = vadd.f32 %v452, %v460
        %vm462 = vcmask 57344
        %463 = vst.msk [vmem:[#allocation3] sm:$0x1] %vm462, %v461
        %v464 = vmul.f32 %v179, %v176
        %v465 = vsel %vm298, %v464, 0.0
        %466 = vadd.xlane.f32.xlu0 %v465
        %v467 = vpop.xlane.xlu0 %466
        %v468 = vmul.f32 %v467, 1.442695
        %v469 = vpow.pop %v468
        %470 = vadd.xlane.f32.xlu0 %v454
        %v471 = vpop.xlane.xlu0 %470
        %v472 = vsel %vm453, %v451, 0.0
        %473 = vadd.xlane.f32.xlu0 %v472
        %v474 = vpop.xlane.xlu0 %473
        %v475 = vadd.f32 %v471, %v474
        %v476 = vsub.f32 %v475, %v469
        %v477 = vmul.f32 %v179, %v178
        %v478 = vsel %vm298, %v477, 0.0
        %479 = vadd.xlane.f32.xlu0 %v478
        %v480 = vpop.xlane.xlu0 %479
        %v481 = vlog2.pop %v476
        %v482 = vmul.f32 %v481, 0.6931472
        %vm483 = vcmask 7168
        %v484 = vsel %vm483, %v482, 0.0
        %485 = vadd.xlane.f32.xlu0 %v484
        %v486 = vpop.xlane.xlu0 %485
        %v487 = vrot.slane %v486, 4
        %v488 = vadd.f32 %v486, %v487
        %v489 = vrot.slane %v488, 2
        %v490 = vadd.f32 %v488, %v489
        %v491 = vrot.slane %v490, 1
        %v492 = vadd.f32 %v490, %v491
        %s493 = vtos %v492
        %v494 = vsel %vm483, %v480, 0.0
        %495 = vadd.xlane.f32.xlu0 %v494
        %v496 = vpop.xlane.xlu0 %495
        %v497 = vrot.slane %v496, 4
        %v498 = vadd.f32 %v496, %v497
        %v499 = vrot.slane %v498, 2
        %v500 = vadd.f32 %v498, %v499
        %v501 = vrot.slane %v500, 1
        %v502 = vadd.f32 %v500, %v501
        %s503 = vtos %v502
        %s504 = smul.f32 %s503, 2.0
        %s505 = ssub.f32 %s493, %s504
        %v506 = vld [vmem:[#allocation9] sm:$0x1]
        %v507 = vstv %s505
        %v508 = vadd.f32 %v506, %v507
        %vm509 = vcmask 0
        %510 = vst.msk [vmem:[#allocation9] sm:$0x1] %vm509, %v508
        // Predicated region
        $region49: #{tpu_custom_call.1} parent=27 // pred_check
          %p511 = pneg %p181
        $region50: #{tpu_custom_call.1} parent=27 // pred_check_branch
          %513 = sbr.rel (%p511) target = $region52
        $region51: #{tpu_custom_call.1} parent=27 // pred_region
          %v514 = vld [vmem:[#allocation3] sm:$0x1]
          %v515 = vld [vmem:[#allocation2] sm:$0x1]
          %v516 = vadd.f32 %v514, %v515
          %v517 = vld [vmem:[#allocation9] sm:$0x1]
          %v518 = vlog2.pop %v516
          %v519 = vmul.f32 %v518, 0.6931472
          %v520 = vsel %vm462, %v519, 0.0
          %521 = vadd.xlane.f32.xlu0 %v520
          %v522 = vpop.xlane.xlu0 %521
          %v523 = vrot.slane %v522, 4
          %v524 = vadd.f32 %v522, %v523
          %v525 = vrot.slane %v524, 2
          %v526 = vadd.f32 %v524, %v525
          %v527 = vrot.slane %v526, 1
          %v528 = vadd.f32 %v526, %v527
          %s529 = vtos %v528
          %v530 = vstv %s529
          %v531 = vadd.f32 %v517, %v530
          %532 = vst.msk [vmem:[#allocation9] sm:$0x1] %vm509, %v531
        $region52: #{tpu_custom_call.1} parent=27 // pred_fallthru
          _
        %p533 = scmp.eq.s32.totalorder %s22, 1
        %p534 = pnand %p533, %p181
        %p535 = pneg %p534
        // Predicated region
        $region53: #{tpu_custom_call.1} parent=27 // pred_check
          _
        $region54: #{tpu_custom_call.1} parent=27 // pred_check_branch
          %537 = sbr.rel (%p534) target = $region56
        $region55: #{tpu_custom_call.1} parent=27 // pred_region
          %v538 = vld [vmem:[#allocation9] sm:$0x1]
          %v539 = vmul.f32 %v538, 0.0625
          %540 = vst.msk [vmem:[#allocation9] sm:$0x1] %vm509, %v539
        $region56: #{tpu_custom_call.1} parent=27 // pred_fallthru
          _
        // Predicated region
        $region57: #{tpu_custom_call.1} parent=27 // pred_check
          %p541 = pneg %p90
        $region58: #{tpu_custom_call.1} parent=27 // pred_check_branch
          %543 = sbr.rel (%p541) target = $region60
        $region59: #{tpu_custom_call.1} parent=27 // pred_region
          %s545 = ssub.s32 16, 16
          %546 = vsyncadd [#allocation6], %s545
          %s548 = sshll.u32 [#allocation9], 4
          %s549 = int_to_ptr.vmem [resolvable:$true] %s548
          %551 = dma.vmem_to_hbm [thread:$0]  %s549, 16, %s2, [#allocation6]
        $region60: #{tpu_custom_call.1} parent=27 // pred_fallthru
          _
        // Predicated region
        $region61: #{tpu_custom_call.1} parent=27 // pred_check
          %p552 = pneg %p90
        $region62: #{tpu_custom_call.1} parent=27 // pred_check_branch
          %554 = sbr.rel (%p552) target = $region64
        $region63: #{tpu_custom_call.1} parent=27 // pred_region
          %555 = dma.done [#allocation6], 16
        $region64: #{tpu_custom_call.1} parent=27 // pred_fallthru
          _
      $region28: #{tpu_custom_call.1} parent=5 // pred_fallthru
        _
      %p556 = scmp.le.s32.totalorder 2, %s13
      // Predicated region
      $region65: #{tpu_custom_call.1} parent=5 // pred_check
        %p557 = pneg %p556
      $region66: #{tpu_custom_call.1} parent=5 // pred_check_branch
        %559 = sbr.rel (%p557) target = $region68
      $region67: #{tpu_custom_call.1} parent=5 // pred_region
        %s560 = ssub.s32 %s13, 2
      $region68: #{tpu_custom_call.1} parent=5 // pred_fallthru
        _
    $region6: #{tpu_custom_call.1} parent=1 // loop_footer
      %s17 = sadd.s32 1, %s13
    $region7: #{tpu_custom_call.1} parent=1 // loop_footer_branch
      %12 = sbr.rel target = $region3
    $region8: #{tpu_custom_call.1} parent=1 // loop_exit
      _
    %561 = vsyncpa [#allocation5], 1
    %s562 = scalar_lea.sflag [#allocation5], 1
    %563 = vsyncpa %s562, 1
    %564 = vsyncpa [#allocation8], 1
    %s565 = scalar_lea.sflag [#allocation8], 1
    %566 = vsyncpa %s565, 1
    %567 = vsyncpa [#allocation6], 1
    %s568 = scalar_lea.sflag [#allocation6], 1
    %569 = vsyncpa %s568, 1

</llo_original>
